<compile_context>
chip_gen: v7x
topology: tpu7x:2x2x1
jax: 0.10.0
libtpu: 0.0.40
codegen_flags: <defaults>
</compile_context>

<pallas_src>
import jax
import jax.numpy as jnp
from jax.experimental import pallas as pl
from jax.experimental.pallas import tpu as pltpu

_LANE = 128
_SUBLANE = 8
_MAX_TILE_ROWS = 4096          # practical ceiling (fits v7x's 64 MiB VMEM in f32)


# --------------------------------------------------------------------------- #
# Kernel
# --------------------------------------------------------------------------- #
def _mlp_kernel(x_ref, w1_ref, b1_ref, w2_ref, b2_ref, w4_ref, b4_ref, o_ref):
    # One batch tile per grid step; weights/biases stay VMEM-resident across
    # steps (constant index_maps). Mixed-dtype dots promote the small resident
    # weights, never the streamed x.
    x = x_ref[...]

    # fc1 + sigmoid (MXU accumulates in f32; activation math in f32).
    h1 = jnp.dot(x, w1_ref[...], preferred_element_type=jnp.float32) + b1_ref[...]
    h1 = jax.nn.sigmoid(h1)

    # fc2 + sigmoid. Padded h1 lanes are sigmoid(0)=0.5 but the matching rows
    # of w2 are zero, so they contribute nothing.
    h2 = jnp.dot(h1, w2_ref[...], preferred_element_type=jnp.float32) + b2_ref[...]
    h2 = jax.nn.sigmoid(h2)

    # fc4 + softmax over the lane-padded class dim. Padded logits carry a
    # -1e30 f32 bias -> exp(logit - max) == 0 -> exact denominator.
    logits = jnp.dot(h2, w4_ref[...], preferred_element_type=jnp.float32) + b4_ref[...]
    m = jnp.max(logits, axis=1, keepdims=True)
    e = jnp.exp(logits - m)
    denom = jnp.sum(e, axis=1, keepdims=True)
    o_ref[...] = (e / denom).astype(o_ref.dtype)   # exact normalization


# --------------------------------------------------------------------------- #
# One-time parameter preparation (hoisted out of the per-call path)
# --------------------------------------------------------------------------- #
def prepare_params(params, *, weight_dtype=jnp.bfloat16):
    """Transpose to (in, out), zero-pad widths to 128 lanes, cast weights.

    Call once at model-load time; the result feeds mnist_forward directly.
    """
    input_size = params["fc1_w"].shape[1]
    num_classes = params["fc4_w"].shape[0]
    H1 = pl.cdiv(params["fc1_w"].shape[0], _LANE) * _LANE   # 50  -> 128
    H2 = pl.cdiv(params["fc2_w"].shape[0], _LANE) * _LANE   # 30  -> 128
    NC = pl.cdiv(num_classes, _LANE) * _LANE                # 10  -> 128

    def zpad(a, shape):
        return jnp.pad(a, [(0, s - d) for s, d in zip(shape, a.shape)])

    b4 = jnp.concatenate(
        [params["fc4_b"].reshape(1, -1).astype(jnp.float32),
         jnp.full((1, NC - num_classes), -1e30, jnp.float32)], axis=1)

    return {
        "w1": zpad(params["fc1_w"].T, (input_size, H1)).astype(weight_dtype),
        "w2": zpad(params["fc2_w"].T, (H1, H2)).astype(weight_dtype),
        "w4": zpad(params["fc4_w"].T, (H2, NC)).astype(weight_dtype),
        "b1": zpad(params["fc1_b"].reshape(1, -1).astype(jnp.float32), (1, H1)),
        "b2": zpad(params["fc2_b"].reshape(1, -1).astype(jnp.float32), (1, H2)),
        "b4": b4,
        "input_size": input_size,
        "num_classes": num_classes,
    }


# --------------------------------------------------------------------------- #
# Tile sizing (generation-aware VMEM budget)
# --------------------------------------------------------------------------- #
def _vmem_capacity_bytes():
    try:
        return int(pltpu.get_tpu_info().vmem_capacity_bytes)
    except Exception:
        return 64 << 20   # conservative fallback (v7x per-TC VMEM)


def _pick_batch_tile(batch, input_size, nc_padded, x_itemsize, vmem_cap,
                     max_rows=_MAX_TILE_ROWS):
    """Largest batch tile that fits ~75% of VMEM, dtype-aligned, >=2 grid steps."""
    # Rows must align to the sublane packing of the streamed x dtype.
    row_align = _SUBLANE * max(1, 4 // max(1, x_itemsize))     # f32:8, bf16:16
    budget = int(vmem_cap * 0.75)
    in_lanes = pl.cdiv(input_size, _LANE) * _LANE              # 784 -> 896 in VMEM
    bytes_per_row = (
        2 * in_lanes * x_itemsize        # double-buffered x tile
        + 2 * nc_padded * 4              # double-buffered f32 output tile
        + 4 * _LANE * 4                  # h1/h2/logits/exp f32 intermediates
    )
    resident = 1 << 20                   # resident weights + scratch margin

    tb = (budget - resident) // max(bytes_per_row, 1)
    tb = max(row_align, min(int(tb), max_rows))
    tb = (tb // row_align) * row_align

    # Never larger than the (aligned) batch.
    tb = min(tb, max(row_align, pl.cdiv(batch, row_align) * row_align))

    # >= 2 grid steps for v7x's two TensorCores when the batch is big enough.
    if batch > 2 * row_align and pl.cdiv(batch, tb) < 2:
        tb = max(row_align, pl.cdiv(pl.cdiv(batch, 2), row_align) * row_align)
    return tb


# --------------------------------------------------------------------------- #
# Forward wrapper
# --------------------------------------------------------------------------- #
def mnist_forward(x, prepped, *, max_block_batch=_MAX_TILE_ROWS,
                  return_padded=False):
    """x: (batch, input_size), any float dtype (no wrapper-side cast or pad).

    prepped: output of prepare_params(). If return_padded=True, returns the
    (batch, 128)-lane-padded softmax buffer (consumer indexes [:, :num_classes])
    to avoid an extra HBM pass for the slice.
    """
    batch, input_size = x.shape
    assert input_size == prepped["input_size"]
    num_classes = prepped["num_classes"]
    w1, b1 = prepped["w1"], prepped["b1"]
    w2, b2 = prepped["w2"], prepped["b2"]
    w4, b4 = prepped["w4"], prepped["b4"]
    H1, H2, NC = w1.shape[1], w2.shape[1], w4.shape[1]

    x_itemsize = jnp.dtype(x.dtype).itemsize
    w_itemsize = jnp.dtype(w1.dtype).itemsize
    vmem_cap = _vmem_capacity_bytes()
    tb = _pick_batch_tile(batch, input_size, NC, x_itemsize, vmem_cap,
                          max_rows=max_block_batch)
    grid = (pl.cdiv(batch, tb),)

    cost = pl.CostEstimate(
        flops=2 * batch * (input_size * H1 + H1 * H2 + H2 * NC),
        transcendentals=batch * (H1 + H2 + NC),
        bytes_accessed=(batch * input_size * x_itemsize
                        + (w1.size + w2.size + w4.size) * w_itemsize
                        + batch * NC * 4),
    )

    out = pl.pallas_call(
        _mlp_kernel,
        out_shape=jax.ShapeDtypeStruct((batch, NC), jnp.float32),
        grid_spec=pltpu.PrefetchScalarGridSpec(
            num_scalar_prefetch=0,
            grid=grid,
            in_specs=[
                pl.BlockSpec((tb, input_size), lambda i: (i, 0)),    # x tile
                pl.BlockSpec((input_size, H1), lambda i: (0, 0)),    # resident
                pl.BlockSpec((1, H1), lambda i: (0, 0)),
                pl.BlockSpec((H1, H2), lambda i: (0, 0)),
                pl.BlockSpec((1, H2), lambda i: (0, 0)),
                pl.BlockSpec((H2, NC), lambda i: (0, 0)),
                pl.BlockSpec((1, NC), lambda i: (0, 0)),
            ],
            out_specs=pl.BlockSpec((tb, NC), lambda i: (i, 0)),      # lane-dense
        ),
        compiler_params=pltpu.CompilerParams(
            dimension_semantics=("parallel",),          # shard batch over 2 TCs
            vmem_limit_bytes=int(vmem_cap * 0.9),       # raise v5e's 16 MiB default
        ),
        cost_estimate=cost,
    )(x, w1, b1, w2, b2, w4, b4)

    if return_padded:
        return out                      # (batch, 128); slice [:, :num_classes] lazily
    return out[:, :num_classes]


# --------------------------------------------------------------------------- #
# Init + pure-JAX reference (PyTorch-equivalent) for testing
# --------------------------------------------------------------------------- #
def init_params(key, input_size, num_classes):
    """Mimics PyTorch nn.Linear default init: U[-1/sqrt(fan_in), +1/sqrt(fan_in)]."""
    def linear_init(k, fan_in, fan_out):
        kw, kb = jax.random.split(k)
        bound = 1.0 / jnp.sqrt(fan_in)
        w = jax.random.uniform(kw, (fan_out, fan_in), jnp.float32, -bound, bound)
        b = jax.random.uniform(kb, (fan_out,), jnp.float32, -bound, bound)
        return w, b

    k1, k2, k4 = jax.random.split(key, 3)
    fc1_w, fc1_b = linear_init(k1, input_size, 50)
    fc2_w, fc2_b = linear_init(k2, 50, 30)
    fc4_w, fc4_b = linear_init(k4, 30, num_classes)
    return {"fc1_w": fc1_w, "fc1_b": fc1_b,
            "fc2_w": fc2_w, "fc2_b": fc2_b,
            "fc4_w": fc4_w, "fc4_b": fc4_b}


def _reference_forward(x, params):
    h1 = jax.nn.sigmoid(x @ params["fc1_w"].T + params["fc1_b"])
    h2 = jax.nn.sigmoid(h1 @ params["fc2_w"].T + params["fc2_b"])
    logits = h2 @ params["fc4_w"].T + params["fc4_b"]
    return jax.nn.softmax(logits, axis=1)


# --------------------------------------------------------------------------- #
# Demo / smoke tests
# --------------------------------------------------------------------------- #
if __name__ == "__main__":
    key = jax.random.PRNGKey(0)
    k_params, k1, k2, k3 = jax.random.split(key, 4)

    input_size, num_classes = 32, 10
    params = init_params(k_params, input_size, num_classes)

    prepped_f32 = prepare_params(params, weight_dtype=jnp.float32)
    prepped_bf16 = prepare_params(params)                    # default bf16 weights

    # 1) Single-tile smoke test, f32 weights (strict tolerance).
    x1 = jax.random.normal(k1, (8, input_size), jnp.float32)
    out1 = jax.block_until_ready(mnist_forward(x1, prepped_f32))
    ref1 = _reference_forward(x1, params)
    assert out1.shape == (8, num_classes)
    assert jnp.allclose(out1, ref1, atol=2e-3, rtol=1e-3)
    assert jnp.allclose(jnp.sum(out1, axis=1), jnp.ones(8), atol=1e-4)

    # 2) Ragged batch (no wrapper padding), multi-step grid, bf16-resident weights.
    x2 = jax.random.normal(k2, (50, input_size), jnp.float32)
    out2 = jax.block_until_ready(mnist_forward(x2, prepped_bf16))
    ref2 = _reference_forward(x2, params)
    assert out2.shape == (50, num_classes)
    assert jnp.allclose(out2, ref2, atol=5e-3)

    # 3) bf16 x streamed straight in (no wrapper cast) + padded-output fast path.
    x3 = jax.random.normal(k3, (300, input_size), jnp.float32).astype(jnp.bfloat16)
    out3 = jax.block_until_ready(mnist_forward(x3, prepped_bf16, return_padded=True))
    ref3 = _reference_forward(x3.astype(jnp.float32), params)
    assert out3.shape[0] == 300 and out3.shape[1] % _LANE == 0
    assert jnp.allclose(out3[:, :num_classes], ref3, atol=3e-2)

    print("KERNEL_OK")
</pallas_src>

<mosaic_0001>
module attributes {stable_mosaic.version = 11 : i64} {
  func.func @_mlp_kernel(%arg0: i32, %arg1: memref<8x32xf32, #tpu.memory_space<vmem>>, %arg2: memref<32x128xf32, #tpu.memory_space<vmem>>, %arg3: memref<1x128xf32, #tpu.memory_space<vmem>>, %arg4: memref<128x128xf32, #tpu.memory_space<vmem>>, %arg5: memref<1x128xf32, #tpu.memory_space<vmem>>, %arg6: memref<128x128xf32, #tpu.memory_space<vmem>>, %arg7: memref<1x128xf32, #tpu.memory_space<vmem>>, %arg8: memref<8x128xf32, #tpu.memory_space<vmem>>) attributes {dimension_semantics = [#tpu.dimension_semantics<parallel>], iteration_bounds = array<i64: 1>, scalar_prefetch = 0 : i64, scratch_operands = 0 : i64, tpu.core_type = #tpu.core_type<tc>, window_params = [{transform_indices = @transform_0, window_bounds = array<i64: 8, 32>}, {pipeline_mode = #tpu.pipeline_mode<synchronous>, transform_indices = @transform_1, window_bounds = array<i64: 32, 128>}, {pipeline_mode = #tpu.pipeline_mode<synchronous>, transform_indices = @transform_2, window_bounds = array<i64: 1, 128>}, {pipeline_mode = #tpu.pipeline_mode<synchronous>, transform_indices = @transform_3, window_bounds = array<i64: 128, 128>}, {pipeline_mode = #tpu.pipeline_mode<synchronous>, transform_indices = @transform_4, window_bounds = array<i64: 1, 128>}, {pipeline_mode = #tpu.pipeline_mode<synchronous>, transform_indices = @transform_5, window_bounds = array<i64: 128, 128>}, {pipeline_mode = #tpu.pipeline_mode<synchronous>, transform_indices = @transform_6, window_bounds = array<i64: 1, 128>}, {transform_indices = @transform_7, window_bounds = array<i64: 8, 128>}]} {
    %c0 = arith.constant 0 : index
    %c0_0 = arith.constant 0 : index
    %0 = vector.load %arg1[%c0, %c0_0] : memref<8x32xf32, #tpu.memory_space<vmem>>, vector<8x32xf32>
    %c0_1 = arith.constant 0 : index
    %c0_2 = arith.constant 0 : index
    %1 = vector.load %arg2[%c0_1, %c0_2] : memref<32x128xf32, #tpu.memory_space<vmem>>, vector<32x128xf32>
    %cst = arith.constant dense<0.000000e+00> : vector<8x128xf32>
    %2 = tpu.matmul %0, %1, %cst {dimension_numbers = #tpu.dot_dimension_numbers<[1], [0], [0], [1], [0, 0, 1, 1], [], []>} : vector<8x32xf32>, vector<32x128xf32>, vector<8x128xf32> -> vector<8x128xf32>
    %c0_3 = arith.constant 0 : index
    %c0_4 = arith.constant 0 : index
    %3 = vector.load %arg3[%c0_3, %c0_4] : memref<1x128xf32, #tpu.memory_space<vmem>>, vector<1x128xf32>
    %4 = vector.broadcast %3 : vector<1x128xf32> to vector<8x128xf32>
    %5 = arith.addf %2, %4 : vector<8x128xf32>
    %6 = arith.negf %5 : vector<8x128xf32>
    %7 = math.exp %6 : vector<8x128xf32>
    %cst_5 = arith.constant 1.000000e+00 : f32
    %8 = vector.broadcast %cst_5 : f32 to vector<8x128xf32>
    %9 = arith.addf %8, %7 : vector<8x128xf32>
    %10 = arith.divf %8, %9 : vector<8x128xf32>
    %c0_6 = arith.constant 0 : index
    %c0_7 = arith.constant 0 : index
    %11 = vector.load %arg4[%c0_6, %c0_7] : memref<128x128xf32, #tpu.memory_space<vmem>>, vector<128x128xf32>
    %cst_8 = arith.constant dense<0.000000e+00> : vector<8x128xf32>
    %12 = tpu.matmul %10, %11, %cst_8 {dimension_numbers = #tpu.dot_dimension_numbers<[1], [0], [0], [1], [0, 0, 1, 1], [], []>} : vector<8x128xf32>, vector<128x128xf32>, vector<8x128xf32> -> vector<8x128xf32>
    %c0_9 = arith.constant 0 : index
    %c0_10 = arith.constant 0 : index
    %13 = vector.load %arg5[%c0_9, %c0_10] : memref<1x128xf32, #tpu.memory_space<vmem>>, vector<1x128xf32>
    %14 = vector.broadcast %13 : vector<1x128xf32> to vector<8x128xf32>
    %15 = arith.addf %12, %14 : vector<8x128xf32>
    %16 = arith.negf %15 : vector<8x128xf32>
    %17 = math.exp %16 : vector<8x128xf32>
    %cst_11 = arith.constant 1.000000e+00 : f32
    %18 = vector.broadcast %cst_11 : f32 to vector<8x128xf32>
    %19 = arith.addf %18, %17 : vector<8x128xf32>
    %20 = arith.divf %18, %19 : vector<8x128xf32>
    %c0_12 = arith.constant 0 : index
    %c0_13 = arith.constant 0 : index
    %21 = vector.load %arg6[%c0_12, %c0_13] : memref<128x128xf32, #tpu.memory_space<vmem>>, vector<128x128xf32>
    %cst_14 = arith.constant dense<0.000000e+00> : vector<8x128xf32>
    %22 = tpu.matmul %20, %21, %cst_14 {dimension_numbers = #tpu.dot_dimension_numbers<[1], [0], [0], [1], [0, 0, 1, 1], [], []>} : vector<8x128xf32>, vector<128x128xf32>, vector<8x128xf32> -> vector<8x128xf32>
    %c0_15 = arith.constant 0 : index
    %c0_16 = arith.constant 0 : index
    %23 = vector.load %arg7[%c0_15, %c0_16] : memref<1x128xf32, #tpu.memory_space<vmem>>, vector<1x128xf32>
    %24 = vector.broadcast %23 : vector<1x128xf32> to vector<8x128xf32>
    %25 = arith.addf %22, %24 : vector<8x128xf32>
    %cst_17 = arith.constant dense<0xFF800000> : vector<8xf32>
    %26 = vector.multi_reduction <maximumf>, %25, %cst_17 [1] : vector<8x128xf32> to vector<8xf32>
    %27 = vector.shape_cast %26 : vector<8xf32> to vector<8x1xf32>
    %28 = vector.broadcast %27 : vector<8x1xf32> to vector<8x128xf32>
    %29 = arith.subf %25, %28 : vector<8x128xf32>
    %30 = math.exp %29 : vector<8x128xf32>
    %cst_18 = arith.constant dense<0.000000e+00> : vector<8xf32>
    %31 = vector.multi_reduction <add>, %30, %cst_18 [1] : vector<8x128xf32> to vector<8xf32>
    %32 = vector.shape_cast %31 : vector<8xf32> to vector<8x1xf32>
    %33 = vector.broadcast %32 : vector<8x1xf32> to vector<8x128xf32>
    %34 = arith.divf %30, %33 : vector<8x128xf32>
    %c0_19 = arith.constant 0 : index
    %c0_20 = arith.constant 0 : index
    %35 = vector.load %arg8[%c0_19, %c0_20] : memref<8x128xf32, #tpu.memory_space<vmem>>, vector<8x128xf32>
    tpu.vector_store %arg8[%c0_19, %c0_20], %34 {strides = array<i32>} : memref<8x128xf32, #tpu.memory_space<vmem>>, vector<8x128xf32>,
    return
  }
  func.func @transform_0(%arg0: i32) -> (i32, i32) {
    %c0_i32 = arith.constant 0 : i32
    %c0_i32_0 = arith.constant 0 : i32
    return %arg0, %c0_i32 : i32, i32
  }
  func.func @transform_1(%arg0: i32) -> (i32, i32) {
    %c0_i32 = arith.constant 0 : i32
    %c0_i32_0 = arith.constant 0 : i32
    %c0_i32_1 = arith.constant 0 : i32
    return %c0_i32, %c0_i32_0 : i32, i32
  }
  func.func @transform_2(%arg0: i32) -> (i32, i32) {
    %c0_i32 = arith.constant 0 : i32
    %c0_i32_0 = arith.constant 0 : i32
    %c0_i32_1 = arith.constant 0 : i32
    return %c0_i32, %c0_i32_0 : i32, i32
  }
  func.func @transform_3(%arg0: i32) -> (i32, i32) {
    %c0_i32 = arith.constant 0 : i32
    %c0_i32_0 = arith.constant 0 : i32
    %c0_i32_1 = arith.constant 0 : i32
    return %c0_i32, %c0_i32_0 : i32, i32
  }
  func.func @transform_4(%arg0: i32) -> (i32, i32) {
    %c0_i32 = arith.constant 0 : i32
    %c0_i32_0 = arith.constant 0 : i32
    %c0_i32_1 = arith.constant 0 : i32
    return %c0_i32, %c0_i32_0 : i32, i32
  }
  func.func @transform_5(%arg0: i32) -> (i32, i32) {
    %c0_i32 = arith.constant 0 : i32
    %c0_i32_0 = arith.constant 0 : i32
    %c0_i32_1 = arith.constant 0 : i32
    return %c0_i32, %c0_i32_0 : i32, i32
  }
  func.func @transform_6(%arg0: i32) -> (i32, i32) {
    %c0_i32 = arith.constant 0 : i32
    %c0_i32_0 = arith.constant 0 : i32
    %c0_i32_1 = arith.constant 0 : i32
    return %c0_i32, %c0_i32_0 : i32, i32
  }
  func.func @transform_7(%arg0: i32) -> (i32, i32) {
    %c0_i32 = arith.constant 0 : i32
    %c0_i32_0 = arith.constant 0 : i32
    return %arg0, %c0_i32 : i32, i32
  }
}

</mosaic_0001>

<llo_original>
// kernel: tpu_custom_call.1
$region0: #{tpu_custom_call.1}
  #allocation0 [shape = 'u32[]', space=smem, size = 0x4, offset = 0x4, fixed_abs, tag = 'smem constant byte address 0x4 - core index']
  #allocation1 [shape = 'u32[144,128]{1,0:T(1,128)}', space=vmem, size = 0x12000, scoped, tag = 'internal scratch']
  %s0 = inlined_call_operand.hbm [shape: f32[8,32], index: 0, kind: input, shape index: {}]
  %s1 = inlined_call_operand.hbm [shape: f32[32,128], index: 1, kind: input, shape index: {}]
  %s2 = inlined_call_operand.vmem [shape: f32[1,128], index: 2, kind: input, shape index: {}]
  %s3 = inlined_call_operand.hbm [shape: f32[128,128], index: 3, kind: input, shape index: {}]
  %s4 = inlined_call_operand.vmem [shape: f32[1,128], index: 4, kind: input, shape index: {}]
  %s5 = inlined_call_operand.hbm [shape: f32[128,128], index: 5, kind: input, shape index: {}]
  %s6 = inlined_call_operand.vmem [shape: f32[1,128], index: 6, kind: input, shape index: {}]
  %s7 = inlined_call_operand.hbm [shape: f32[8,128], index: 7, kind: output, shape index: {}]
  %s8 = sld [smem:[#allocation0]]
  $region54: #{tpu_custom_call.1} parent=0
    _
  %s10 = ssub.s32 1, %s8
  %s11 = scalar_select 0, %s10, %s8
  $region1: #{tpu_custom_call.1} parent=0
    #allocation2 [shape = 'u8[4096]{0}', space=vmem, size = 0x1000, scoped, tag = 'input window, operand 0, single buffered']
    #allocation3 [shape = 's32[1]{0}', space=sflag, size = 0x4, scoped, tag = 'scoped memory for tpu_custom_call.1']
    #allocation4 [shape = 's32[1]{0}', space=sflag, size = 0x4, scoped, tag = 'scoped memory for tpu_custom_call.1']
    #allocation5 [shape = 'u8[16384]{0}', space=vmem, size = 0x4000, scoped, tag = 'input window, operand 1, single buffered']
    #allocation6 [shape = 's32[1]{0}', space=sflag, size = 0x4, scoped, tag = 'scoped memory for tpu_custom_call.1']
    #allocation7 [shape = 'u8[65536]{0}', space=vmem, size = 0x10000, scoped, tag = 'input window, operand 3, single buffered']
    #allocation8 [shape = 'u8[65536]{0}', space=vmem, size = 0x10000, scoped, tag = 'input window, operand 5, single buffered']
    #allocation9 [shape = 's32[1]{0}', space=sflag, size = 0x4, scoped, tag = 'scoped memory for tpu_custom_call.1']
    #allocation10 [shape = 'u8[4096]{0}', space=vmem, size = 0x1000, scoped, tag = 'output window, operand 0, single buffered']
    %12 = vsyncpa [#allocation3], 0
    %13 = vsyncpa [#allocation6], 0
    %14 = vsyncpa [#allocation9], 0
    %15 = vsyncpa [#allocation4], 0
    // Predicated region
    $region2: #{tpu_custom_call.1} parent=1 // pred_check
      _
    $region3: #{tpu_custom_call.1} parent=1 // pred_check_branch
      %17 = sbr.rel (0) target = $region5
    $region4: #{tpu_custom_call.1} parent=1 // pred_region
      %s19 = ssub.s32 128, 128
      %20 = vsyncadd [#allocation3], %s19
      %s22 = sshll.u32 [#allocation2], 4
      %s23 = int_to_ptr.vmem [resolvable:$true] %s22
      %25 = dma.hbm_to_vmem [thread:$0]  %s0, 128, %s23, [#allocation3]
    $region5: #{tpu_custom_call.1} parent=1 // pred_fallthru
      _
    // Predicated region
    $region6: #{tpu_custom_call.1} parent=1 // pred_check
      _
    $region7: #{tpu_custom_call.1} parent=1 // pred_check_branch
      %27 = sbr.rel (0) target = $region9
    $region8: #{tpu_custom_call.1} parent=1 // pred_region
      %s29 = ssub.s32 512, 512
      %30 = vsyncadd [#allocation6], %s29
      %s31 = sshll.u32 [#allocation5], 4
      %s32 = int_to_ptr.vmem [resolvable:$true] %s31
      %37 = dma.hbm_to_vmem [thread:$0]  %s1, 512, %s32, [#allocation6], 128, 128, 8
    $region9: #{tpu_custom_call.1} parent=1 // pred_fallthru
      _
    // Predicated region
    $region10: #{tpu_custom_call.1} parent=1 // pred_check
      _
    $region11: #{tpu_custom_call.1} parent=1 // pred_check_branch
      %39 = sbr.rel (0) target = $region13
    $region12: #{tpu_custom_call.1} parent=1 // pred_region
      _
    $region13: #{tpu_custom_call.1} parent=1 // pred_fallthru
      _
    // Predicated region
    $region14: #{tpu_custom_call.1} parent=1 // pred_check
      _
    $region15: #{tpu_custom_call.1} parent=1 // pred_check_branch
      %41 = sbr.rel (0) target = $region17
    $region16: #{tpu_custom_call.1} parent=1 // pred_region
      %s43 = ssub.s32 2048, 2048
      %44 = vsyncadd [#allocation6], %s43
      %s45 = sshll.u32 [#allocation7], 4
      %s46 = int_to_ptr.vmem [resolvable:$true] %s45
      %51 = dma.hbm_to_vmem [thread:$0]  %s3, 2048, %s46, [#allocation6], 128, 128, 8
    $region17: #{tpu_custom_call.1} parent=1 // pred_fallthru
      _
    // Predicated region
    $region18: #{tpu_custom_call.1} parent=1 // pred_check
      _
    $region19: #{tpu_custom_call.1} parent=1 // pred_check_branch
      %53 = sbr.rel (0) target = $region21
    $region20: #{tpu_custom_call.1} parent=1 // pred_region
      _
    $region21: #{tpu_custom_call.1} parent=1 // pred_fallthru
      _
    // Predicated region
    $region22: #{tpu_custom_call.1} parent=1 // pred_check
      _
    $region23: #{tpu_custom_call.1} parent=1 // pred_check_branch
      %55 = sbr.rel (0) target = $region25
    $region24: #{tpu_custom_call.1} parent=1 // pred_region
      %s57 = ssub.s32 2048, 2048
      %58 = vsyncadd [#allocation9], %s57
      %s59 = sshll.u32 [#allocation8], 4
      %s60 = int_to_ptr.vmem [resolvable:$true] %s59
      %65 = dma.hbm_to_vmem [thread:$0]  %s5, 2048, %s60, [#allocation9], 128, 128, 8
    $region25: #{tpu_custom_call.1} parent=1 // pred_fallthru
      _
    // Predicated region
    $region26: #{tpu_custom_call.1} parent=1 // pred_check
      _
    $region27: #{tpu_custom_call.1} parent=1 // pred_check_branch
      %67 = sbr.rel (0) target = $region29
    $region28: #{tpu_custom_call.1} parent=1 // pred_region
      _
    $region29: #{tpu_custom_call.1} parent=1 // pred_fallthru
      _
    // Predicated region
    $region30: #{tpu_custom_call.1} parent=1 // pred_check
      _
    $region31: #{tpu_custom_call.1} parent=1 // pred_check_branch
      %69 = sbr.rel (0) target = $region33
    $region32: #{tpu_custom_call.1} parent=1 // pred_region
      %70 = dma.done [#allocation3], 128
    $region33: #{tpu_custom_call.1} parent=1 // pred_fallthru
      _
    // Predicated region
    $region34: #{tpu_custom_call.1} parent=1 // pred_check
      _
    $region35: #{tpu_custom_call.1} parent=1 // pred_check_branch
      %72 = sbr.rel (0) target = $region37
    $region36: #{tpu_custom_call.1} parent=1 // pred_region
      %73 = dma.done [#allocation6], 512
    $region37: #{tpu_custom_call.1} parent=1 // pred_fallthru
      _
    // Predicated region
    $region38: #{tpu_custom_call.1} parent=1 // pred_check
      _
    $region39: #{tpu_custom_call.1} parent=1 // pred_check_branch
      %75 = sbr.rel (0) target = $region41
    $region40: #{tpu_custom_call.1} parent=1 // pred_region
      %76 = dma.done [#allocation6], 2048
    $region41: #{tpu_custom_call.1} parent=1 // pred_fallthru
      _
    // Predicated region
    $region42: #{tpu_custom_call.1} parent=1 // pred_check
      _
    $region43: #{tpu_custom_call.1} parent=1 // pred_check_branch
      %78 = sbr.rel (0) target = $region45
    $region44: #{tpu_custom_call.1} parent=1 // pred_region
      %79 = dma.done [#allocation9], 2048
    $region45: #{tpu_custom_call.1} parent=1 // pred_fallthru
      _
    %v80 = vld [vmem:[#allocation2] sm:$0xff]
    %v81 = vld [vmem:[#allocation5] sm:$0xff]
    %v82 = vld [vmem:[#allocation5 + $0x8] sm:$0xff]
    %v83 = vld [vmem:[#allocation5 + $0x10] sm:$0xff]
    %v84 = vld [vmem:[#allocation5 + $0x18] sm:$0xff]
    %v85 = vld [vmem:[%s2] sm:$0x1]
    %v87 = vlaneseq
    %v88 = vshrl.u32 %v87, 7
    %v89 = vsub.s32 0, %v88
    %v90 = vrot.slane %v85, %v89
    %vm92 = vcmask 261120
    %v94 = vsel %vm92, %v80, 0
    %96 = vmatprep.subr.mxu0 0.0
    %97 = vmatpush1.msra.mxu0 %v81
    %98 = vmatprep.subr.mxu0 0.0
    %99 = vmatpush1.msra.mxu0 %v82
    %100 = vmatprep.subr.mxu0 0.0
    %101 = vmatpush1.msra.mxu0 %v83
    %102 = vmatprep.subr.mxu0 0.0
    %103 = vmatpush1.msra.mxu0 %v84
    %104 = vmatprep.subr.mxu0 0.0
    %105 = vmatpush1.msra.mxu0 0.0
    %106 = vmatprep.subr.mxu0 0.0
    %107 = vmatpush1.msra.mxu0 0.0
    %108 = vmatprep.subr.mxu0 0.0
    %109 = vmatpush1.msra.mxu0 0.0
    %110 = vmatprep.subr.mxu0 0.0
    %111 = vmatpush1.msra.mxu0 0.0
    %112 = vmatprep.subr.mxu0 0.0
    %113 = vmatpush1.msra.mxu0 0.0
    %114 = vmatprep.subr.mxu0 0.0
    %115 = vmatpush1.msra.mxu0 0.0
    %116 = vmatprep.subr.mxu0 0.0
    %117 = vmatpush1.msra.mxu0 0.0
    %118 = vmatprep.subr.mxu0 0.0
    %119 = vmatpush1.msra.mxu0 0.0
    %120 = vmatprep.subr.mxu0 0.0
    %121 = vmatpush1.msra.mxu0 0.0
    %122 = vmatprep.subr.mxu0 0.0
    %123 = vmatpush1.msra.mxu0 0.0
    %124 = vmatprep.subr.mxu0 0.0
    %125 = vmatpush1.msra.mxu0 0.0
    %126 = vmatprep.subr.mxu0 0.0
    %127 = vmatpush1.msra.mxu0 0.0
    %128 = vmatprep.subr.mxu0 0.0
    %129 = vmatpush1.msra.mxu0 0.0
    %130 = vmatprep.subr.mxu0 0.0
    %131 = vmatpush1.msra.mxu0 0.0
    %132 = vmatprep.subr.mxu0 0.0
    %133 = vmatpush1.msra.mxu0 0.0
    %134 = vmatprep.subr.mxu0 0.0
    %135 = vmatpush1.msra.mxu0 0.0
    %136 = vmatprep.subr.mxu0 0.0
    %137 = vmatpush1.msra.mxu0 0.0
    %138 = vmatprep.subr.mxu0 0.0
    %139 = vmatpush1.msra.mxu0 0.0
    %140 = vmatprep.subr.mxu0 0.0
    %141 = vmatpush1.msra.mxu0 0.0
    %142 = vmatprep.subr.mxu0 0.0
    %143 = vmatpush1.msra.mxu0 0.0
    %144 = vmatprep.subr.mxu0 0.0
    %145 = vmatpush1.msra.mxu0 0.0
    %146 = vmatprep.subr.mxu0 0.0
    %147 = vmatpush1.msra.mxu0 0.0
    %148 = vmatprep.subr.mxu0 0.0
    %149 = vmatpush1.msra.mxu0 0.0
    %150 = vmatprep.subr.mxu0 0.0
    %151 = vmatpush1.msra.mxu0 0.0
    %152 = vmatprep.subr.mxu0 0.0
    %153 = vmatpush1.msra.mxu0 0.0
    %154 = vmatprep.subr.mxu0 0.0
    %155 = vmatpush1.msra.mxu0 0.0
    %156 = vmatprep.subr.mxu0 0.0
    %157 = vmatpush1.msra.mxu0 0.0
    %158 = vmatprep.subr.mxu0 0.0
    %159 = vmatpush1.msra.mxu0 0.0
    %160 = vmatprep.mubr.f32.mxu0 0.0
    %161 = vmatmul.mubr.f32.gmra.mrb[0].mxu0 %v94
    %v162 = vpop.f32.mrb[0].mxu0
    %v163 = vadd.f32 %v90, %v162
    %v164 = vpop.f32.mrb[0].mxu0
    %165 = vdwg.mxu0
    %v166 = vxor.u32 %v163, 2147483648
    %v167 = vmul.f32 %v166, 1.442695
    %v168 = vpow.pop %v167
    %v169 = vadd.f32 %v168, 1.0
    %v170 = vrcp.pop %v169
    %v171 = vmul.f32 1.0, %v170
    %v172 = vld [vmem:[#allocation7] sm:$0xff]
    %v173 = vld [vmem:[#allocation7 + $0x8] sm:$0xff]
    %v174 = vld [vmem:[#allocation7 + $0x10] sm:$0xff]
    %v175 = vld [vmem:[#allocation7 + $0x18] sm:$0xff]
    %v176 = vld [vmem:[#allocation7 + $0x20] sm:$0xff]
    %v177 = vld [vmem:[#allocation7 + $0x28] sm:$0xff]
    %v178 = vld [vmem:[#allocation7 + $0x30] sm:$0xff]
    %v179 = vld [vmem:[#allocation7 + $0x38] sm:$0xff]
    %v180 = vld [vmem:[#allocation7 + $0x40] sm:$0xff]
    %v181 = vld [vmem:[#allocation7 + $0x48] sm:$0xff]
    %v182 = vld [vmem:[#allocation7 + $0x50] sm:$0xff]
    %v183 = vld [vmem:[#allocation7 + $0x58] sm:$0xff]
    %v184 = vld [vmem:[#allocation7 + $0x60] sm:$0xff]
    %v185 = vld [vmem:[#allocation7 + $0x68] sm:$0xff]
    %v186 = vld [vmem:[#allocation7 + $0x70] sm:$0xff]
    %v187 = vld [vmem:[#allocation7 + $0x78] sm:$0xff]
    %v188 = vld [vmem:[%s4] sm:$0x1]
    %v190 = vlaneseq
    %v191 = vshrl.u32 %v190, 7
    %v192 = vsub.s32 0, %v191
    %v193 = vrot.slane %v188, %v192
    %195 = vmatprep.subr.mxu0 0.0
    %196 = vmatpush1.msra.mxu0 %v172
    %197 = vmatprep.subr.mxu0 0.0
    %198 = vmatpush1.msra.mxu0 %v173
    %199 = vmatprep.subr.mxu0 0.0
    %200 = vmatpush1.msra.mxu0 %v174
    %201 = vmatprep.subr.mxu0 0.0
    %202 = vmatpush1.msra.mxu0 %v175
    %203 = vmatprep.subr.mxu0 0.0
    %204 = vmatpush1.msra.mxu0 %v176
    %205 = vmatprep.subr.mxu0 0.0
    %206 = vmatpush1.msra.mxu0 %v177
    %207 = vmatprep.subr.mxu0 0.0
    %208 = vmatpush1.msra.mxu0 %v178
    %209 = vmatprep.subr.mxu0 0.0
    %210 = vmatpush1.msra.mxu0 %v179
    %211 = vmatprep.subr.mxu0 0.0
    %212 = vmatpush1.msra.mxu0 %v180
    %213 = vmatprep.subr.mxu0 0.0
    %214 = vmatpush1.msra.mxu0 %v181
    %215 = vmatprep.subr.mxu0 0.0
    %216 = vmatpush1.msra.mxu0 %v182
    %217 = vmatprep.subr.mxu0 0.0
    %218 = vmatpush1.msra.mxu0 %v183
    %219 = vmatprep.subr.mxu0 0.0
    %220 = vmatpush1.msra.mxu0 %v184
    %221 = vmatprep.subr.mxu0 0.0
    %222 = vmatpush1.msra.mxu0 %v185
    %223 = vmatprep.subr.mxu0 0.0
    %224 = vmatpush1.msra.mxu0 %v186
    %225 = vmatprep.subr.mxu0 0.0
    %226 = vmatpush1.msra.mxu0 %v187
    %227 = vmatprep.subr.mxu0 0.0
    %228 = vmatpush1.msra.mxu0 0.0
    %229 = vmatprep.subr.mxu0 0.0
    %230 = vmatpush1.msra.mxu0 0.0
    %231 = vmatprep.subr.mxu0 0.0
    %232 = vmatpush1.msra.mxu0 0.0
    %233 = vmatprep.subr.mxu0 0.0
    %234 = vmatpush1.msra.mxu0 0.0
    %235 = vmatprep.subr.mxu0 0.0
    %236 = vmatpush1.msra.mxu0 0.0
    %237 = vmatprep.subr.mxu0 0.0
    %238 = vmatpush1.msra.mxu0 0.0
    %239 = vmatprep.subr.mxu0 0.0
    %240 = vmatpush1.msra.mxu0 0.0
    %241 = vmatprep.subr.mxu0 0.0
    %242 = vmatpush1.msra.mxu0 0.0
    %243 = vmatprep.subr.mxu0 0.0
    %244 = vmatpush1.msra.mxu0 0.0
    %245 = vmatprep.subr.mxu0 0.0
    %246 = vmatpush1.msra.mxu0 0.0
    %247 = vmatprep.subr.mxu0 0.0
    %248 = vmatpush1.msra.mxu0 0.0
    %249 = vmatprep.subr.mxu0 0.0
    %250 = vmatpush1.msra.mxu0 0.0
    %251 = vmatprep.subr.mxu0 0.0
    %252 = vmatpush1.msra.mxu0 0.0
    %253 = vmatprep.subr.mxu0 0.0
    %254 = vmatpush1.msra.mxu0 0.0
    %255 = vmatprep.subr.mxu0 0.0
    %256 = vmatpush1.msra.mxu0 0.0
    %257 = vmatprep.subr.mxu0 0.0
    %258 = vmatpush1.msra.mxu0 0.0
    %259 = vmatprep.mubr.f32.mxu0 0.0
    %260 = vmatmul.mubr.f32.gmra.mrb[0].mxu0 %v171
    %v261 = vpop.f32.mrb[0].mxu0
    %v262 = vadd.f32 %v193, %v261
    %v263 = vpop.f32.mrb[0].mxu0
    %264 = vdwg.mxu0
    %v265 = vxor.u32 %v262, 2147483648
    %v266 = vmul.f32 %v265, 1.442695
    %v267 = vpow.pop %v266
    %v268 = vadd.f32 %v267, 1.0
    %v269 = vrcp.pop %v268
    %v270 = vmul.f32 1.0, %v269
    %v271 = vld [vmem:[#allocation8] sm:$0xff]
    %v272 = vld [vmem:[#allocation8 + $0x8] sm:$0xff]
    %v273 = vld [vmem:[#allocation8 + $0x10] sm:$0xff]
    %v274 = vld [vmem:[#allocation8 + $0x18] sm:$0xff]
    %v275 = vld [vmem:[#allocation8 + $0x20] sm:$0xff]
    %v276 = vld [vmem:[#allocation8 + $0x28] sm:$0xff]
    %v277 = vld [vmem:[#allocation8 + $0x30] sm:$0xff]
    %v278 = vld [vmem:[#allocation8 + $0x38] sm:$0xff]
    %v279 = vld [vmem:[#allocation8 + $0x40] sm:$0xff]
    %v280 = vld [vmem:[#allocation8 + $0x48] sm:$0xff]
    %v281 = vld [vmem:[#allocation8 + $0x50] sm:$0xff]
    %v282 = vld [vmem:[#allocation8 + $0x58] sm:$0xff]
    %v283 = vld [vmem:[#allocation8 + $0x60] sm:$0xff]
    %v284 = vld [vmem:[#allocation8 + $0x68] sm:$0xff]
    %v285 = vld [vmem:[#allocation8 + $0x70] sm:$0xff]
    %v286 = vld [vmem:[#allocation8 + $0x78] sm:$0xff]
    %v287 = vld [vmem:[%s6] sm:$0x1]
    %v289 = vlaneseq
    %v290 = vshrl.u32 %v289, 7
    %v291 = vsub.s32 0, %v290
    %v292 = vrot.slane %v287, %v291
    %294 = vmatprep.subr.mxu0 0.0
    %295 = vmatpush1.msra.mxu0 %v271
    %296 = vmatprep.subr.mxu0 0.0
    %297 = vmatpush1.msra.mxu0 %v272
    %298 = vmatprep.subr.mxu0 0.0
    %299 = vmatpush1.msra.mxu0 %v273
    %300 = vmatprep.subr.mxu0 0.0
    %301 = vmatpush1.msra.mxu0 %v274
    %302 = vmatprep.subr.mxu0 0.0
    %303 = vmatpush1.msra.mxu0 %v275
    %304 = vmatprep.subr.mxu0 0.0
    %305 = vmatpush1.msra.mxu0 %v276
    %306 = vmatprep.subr.mxu0 0.0
    %307 = vmatpush1.msra.mxu0 %v277
    %308 = vmatprep.subr.mxu0 0.0
    %309 = vmatpush1.msra.mxu0 %v278
    %310 = vmatprep.subr.mxu0 0.0
    %311 = vmatpush1.msra.mxu0 %v279
    %312 = vmatprep.subr.mxu0 0.0
    %313 = vmatpush1.msra.mxu0 %v280
    %314 = vmatprep.subr.mxu0 0.0
    %315 = vmatpush1.msra.mxu0 %v281
    %316 = vmatprep.subr.mxu0 0.0
    %317 = vmatpush1.msra.mxu0 %v282
    %318 = vmatprep.subr.mxu0 0.0
    %319 = vmatpush1.msra.mxu0 %v283
    %320 = vmatprep.subr.mxu0 0.0
    %321 = vmatpush1.msra.mxu0 %v284
    %322 = vmatprep.subr.mxu0 0.0
    %323 = vmatpush1.msra.mxu0 %v285
    %324 = vmatprep.subr.mxu0 0.0
    %325 = vmatpush1.msra.mxu0 %v286
    %326 = vmatprep.subr.mxu0 0.0
    %327 = vmatpush1.msra.mxu0 0.0
    %328 = vmatprep.subr.mxu0 0.0
    %329 = vmatpush1.msra.mxu0 0.0
    %330 = vmatprep.subr.mxu0 0.0
    %331 = vmatpush1.msra.mxu0 0.0
    %332 = vmatprep.subr.mxu0 0.0
    %333 = vmatpush1.msra.mxu0 0.0
    %334 = vmatprep.subr.mxu0 0.0
    %335 = vmatpush1.msra.mxu0 0.0
    %336 = vmatprep.subr.mxu0 0.0
    %337 = vmatpush1.msra.mxu0 0.0
    %338 = vmatprep.subr.mxu0 0.0
    %339 = vmatpush1.msra.mxu0 0.0
    %340 = vmatprep.subr.mxu0 0.0
    %341 = vmatpush1.msra.mxu0 0.0
    %342 = vmatprep.subr.mxu0 0.0
    %343 = vmatpush1.msra.mxu0 0.0
    %344 = vmatprep.subr.mxu0 0.0
    %345 = vmatpush1.msra.mxu0 0.0
    %346 = vmatprep.subr.mxu0 0.0
    %347 = vmatpush1.msra.mxu0 0.0
    %348 = vmatprep.subr.mxu0 0.0
    %349 = vmatpush1.msra.mxu0 0.0
    %350 = vmatprep.subr.mxu0 0.0
    %351 = vmatpush1.msra.mxu0 0.0
    %352 = vmatprep.subr.mxu0 0.0
    %353 = vmatpush1.msra.mxu0 0.0
    %354 = vmatprep.subr.mxu0 0.0
    %355 = vmatpush1.msra.mxu0 0.0
    %356 = vmatprep.subr.mxu0 0.0
    %357 = vmatpush1.msra.mxu0 0.0
    %358 = vmatprep.mubr.f32.mxu0 0.0
    %359 = vmatmul.mubr.f32.gmra.mrb[0].mxu0 %v270
    %v360 = vpop.f32.mrb[0].mxu0
    %v361 = vadd.f32 %v292, %v360
    %v362 = vpop.f32.mrb[0].mxu0
    %363 = vdwg.mxu0
    %364 = vmax.xlane.f32.xlu0 %v361
    %v365 = vpop.xlane.xlu0 %364
    %v366 = vsub.f32 %v361, %v365
    %v367 = vmul.f32 %v366, 1.442695
    %v368 = vpow.pop %v367
    %369 = vadd.xlane.f32.xlu0 %v368
    %v370 = vpop.xlane.xlu0 %369
    %v371 = vrcp.pop %v370
    %v372 = vmul.f32 %v368, %v371
    %373 = vst [vmem:[#allocation10] sm:$0xff] %v372
    // Predicated region
    $region46: #{tpu_custom_call.1} parent=1 // pred_check
      _
    $region47: #{tpu_custom_call.1} parent=1 // pred_check_branch
      %375 = sbr.rel (0) target = $region49
    $region48: #{tpu_custom_call.1} parent=1 // pred_region
      %s377 = ssub.s32 128, 128
      %378 = vsyncadd [#allocation4], %s377
      %s380 = sshll.u32 [#allocation10], 4
      %s381 = int_to_ptr.vmem [resolvable:$true] %s380
      %383 = dma.vmem_to_hbm [thread:$0]  %s381, 128, %s7, [#allocation4]
    $region49: #{tpu_custom_call.1} parent=1 // pred_fallthru
      _
    // Predicated region
    $region50: #{tpu_custom_call.1} parent=1 // pred_check
      _
    $region51: #{tpu_custom_call.1} parent=1 // pred_check_branch
      %385 = sbr.rel (0) target = $region53
    $region52: #{tpu_custom_call.1} parent=1 // pred_region
      %386 = dma.done [#allocation4], 128
    $region53: #{tpu_custom_call.1} parent=1 // pred_fallthru
      _
    %387 = vsyncpa [#allocation3], 1
    %388 = vsyncpa [#allocation6], 1
    %389 = vsyncpa [#allocation9], 1
    %390 = vsyncpa [#allocation4], 1

</llo_original>
